<compile_context>
chip_gen: v7x
topology: tpu7x:2x2x1
jax: 0.10.0
libtpu: 0.0.40
codegen_flags: <defaults>
</compile_context>

<pallas_src>
import jax
import jax.numpy as jnp
from jax.experimental import pallas as pl
from jax.experimental.pallas import tpu as pltpu


def _round_up(a, b):
    return (a + b - 1) // b * b


def _cdiv(a, b):
    return -(-a // b)


def _const_block_spec(shape):
    """BlockSpec with a constant index_map, single-buffered (re-fetch never happens)."""
    idx = lambda *args: (0,) * len(shape)
    try:
        return pl.BlockSpec(shape, idx, pipeline_mode=pl.Buffered(1))
    except (TypeError, AttributeError):
        # older JAX without pipeline_mode support: fall back to default buffering
        return pl.BlockSpec(shape, idx)


# ----------------------------------------------------------------------------
# Phase 1 kernel.  grid = (node tiles [parallel], E tiles [arbitrary/reduction])
#   acc (2*tile_n, Cp) f32  +=  [Bin_re_t; Bin_im_t] (2*tile_n, tile_e) @ hb (tile_e, Cp)
#   finalize (last E tile): A = acc[:tile_n], B = acc[tile_n:]  (cast bf16)
#       Y  = A @ WA  + B @ WB          (node transform, de-interleaved, cols inv-permuted)
#       YK = A @ WAK + B @ WBK         (= Y @ K, for the conj-transpose imag combine)
#   writes stacked output yyk[0]=Y, yyk[1]=YK for this node tile.
# ----------------------------------------------------------------------------
def _phase1_kernel(hb_ref, binc_ref, wA_ref, wB_ref, wAK_ref, wBK_ref,
                   yyk_ref, acc_ref):
    f32 = jnp.float32
    k = pl.program_id(1)

    @pl.when(k == 0)
    def _():
        acc_ref[...] = jnp.zeros_like(acc_ref)

    # single fused bf16 matmul per step (re and im incidence stacked on rows)
    acc_ref[...] += jnp.dot(binc_ref[...], hb_ref[...], preferred_element_type=f32)

    @pl.when(k == pl.num_programs(1) - 1)
    def _():
        tn = yyk_ref.shape[1]
        ab = acc_ref[...]
        a = ab[:tn].astype(jnp.bfloat16)     # A = Bin_re @ h   (this node tile)
        b = ab[tn:].astype(jnp.bfloat16)     # B = Bin_im @ h
        y = (jnp.dot(a, wA_ref[...], preferred_element_type=f32)
             + jnp.dot(b, wB_ref[...], preferred_element_type=f32))
        yk = (jnp.dot(a, wAK_ref[...], preferred_element_type=f32)
              + jnp.dot(b, wBK_ref[...], preferred_element_type=f32))
        yyk_ref[0, :, :] = y.astype(yyk_ref.dtype)
        yyk_ref[1, :, :] = yk.astype(yyk_ref.dtype)


def _eign_phase1(hb, binc, wA, wB, wAK, wBK, *, tile_n, tile_e, vmem_limit):
    Ep, Cp = hb.shape
    n_nt = binc.shape[0] // (2 * tile_n)
    Np = n_nt * tile_n
    nk = Ep // tile_e
    return pl.pallas_call(
        _phase1_kernel,
        out_shape=jax.ShapeDtypeStruct((2, Np, Cp), jnp.bfloat16),
        grid=(n_nt, nk),
        in_specs=[
            pl.BlockSpec((tile_e, Cp), lambda t, k: (k, 0)),
            pl.BlockSpec((2 * tile_n, tile_e), lambda t, k: (t, k)),
            _const_block_spec((Cp, Cp)),
            _const_block_spec((Cp, Cp)),
            _const_block_spec((Cp, Cp)),
            _const_block_spec((Cp, Cp)),
        ],
        out_specs=pl.BlockSpec((2, tile_n, Cp), lambda t, k: (0, t, 0)),
        scratch_shapes=[pltpu.VMEM((2 * tile_n, Cp), jnp.float32)],
        compiler_params=pltpu.CompilerParams(
            dimension_semantics=("parallel", "arbitrary"),
            vmem_limit_bytes=vmem_limit),
    )(hb, binc, wA, wB, wAK, wBK)


# ----------------------------------------------------------------------------
# Phase 2 kernel.  grid = (E tiles,) fully parallel, purely streaming.
#   out_tile = [Bout_re^T | Bout_im^T]_tile (tile_e, 2*Np) @ [Y; YK] (2*Np, Cp) + bias
# ----------------------------------------------------------------------------
def _phase2_kernel(boutT_ref, yyk_ref, bias_ref, out_ref):
    o = jnp.dot(boutT_ref[...], yyk_ref[...], preferred_element_type=jnp.float32)
    out_ref[...] = (o + bias_ref[...]).astype(out_ref.dtype)


def _eign_phase2(boutT, yyk, bias_row, *, tile_e, vmem_limit):
    Ep, twoNp = boutT.shape
    Cp = yyk.shape[1]
    ne = Ep // tile_e
    return pl.pallas_call(
        _phase2_kernel,
        out_shape=jax.ShapeDtypeStruct((Ep, Cp), jnp.float32),
        grid=(ne,),
        in_specs=[
            pl.BlockSpec((tile_e, twoNp), lambda i: (i, 0)),
            _const_block_spec((twoNp, Cp)),
            _const_block_spec((1, Cp)),
        ],
        out_specs=pl.BlockSpec((tile_e, Cp), lambda i: (i, 0)),
        compiler_params=pltpu.CompilerParams(
            dimension_semantics=("parallel",),
            vmem_limit_bytes=vmem_limit),
    )(boutT, yyk, bias_row)


# ----------------------------------------------------------------------------
# Plain-JAX glue: magnetic edge incidence construction + degree normalization.
# ----------------------------------------------------------------------------
def build_incidences(edge_index, is_directed, num_nodes, q, signed_in, signed_out,
                     normalize=True):
    src, dst = edge_index[0], edge_index[1]
    E = src.shape[0]
    cols = jnp.arange(E)
    theta = jnp.pi * q * is_directed.astype(jnp.float32)
    ph_re, ph_im = jnp.cos(theta), jnp.sin(theta)

    def build(signed):
        s = -1.0 if signed else 1.0
        re = (jnp.zeros((num_nodes, E), jnp.float32)
              .at[src, cols].add(s)
              .at[dst, cols].add(ph_re))
        im = jnp.zeros((num_nodes, E), jnp.float32).at[dst, cols].add(ph_im)
        return re, im

    bin_re, bin_im = build(signed_in)
    bout_re, bout_im = build(signed_out)

    if normalize:
        # deg_e = |diag(B_in^H B_out)_e| computed in O(N*E) without the (E,E) Laplacian
        d_re = (bin_re * bout_re + bin_im * bout_im).sum(axis=0)
        d_im = (bin_re * bout_im - bin_im * bout_re).sum(axis=0)
        deg = jnp.sqrt(d_re * d_re + d_im * d_im)
        safe = jnp.where(deg > 0, deg, 1.0)          # avoids inf/NaN-grad at deg==0
        dinv = jnp.where(deg > 0, safe ** -0.5, 0.0).astype(jnp.float32)
        bin_re = bin_re * dinv[None, :]
        bin_im = bin_im * dinv[None, :]
        bout_re = bout_re * dinv[None, :]
        bout_im = bout_im * dinv[None, :]

    return bin_re, bin_im, bout_re, bout_im


def magnetic_edge_laplacian_conv_forward(x, edge_index, is_directed, num_nodes,
                                         w_lin, w_node, bias, q=1.0,
                                         signed_in=True, signed_out=True,
                                         normalize=True, tile_e=512, tile_n_max=256,
                                         vmem_limit_bytes=48 * 1024 * 1024):
    """Full forward.
    w_lin : (C_in, C_out) = lin.weight.T
    w_node: (C_out, C_out) node Linear weight (applied as y = x @ w_node.T)
    bias  : (C_out,) or None
    """
    E, Cin = x.shape
    C = w_lin.shape[1]
    assert C % 2 == 0
    assert tile_e % 128 == 0, "tile_e is the lane dim of the incidence blocks"
    C2 = C // 2

    bin_re, bin_im, bout_re, bout_im = build_incidences(
        edge_index, is_directed, num_nodes, q, signed_in, signed_out, normalize)

    # interleaved <-> de-interleaved channel permutations (wrapper glue only)
    perm = jnp.concatenate([jnp.arange(0, C, 2), jnp.arange(1, C, 2)])
    inv_perm = jnp.argsort(perm)

    # padding / tiling choices
    Cp = _round_up(max(C, 128), 128)              # lane-dense channel padding
    Np16 = _round_up(num_nodes, 16)               # bf16 sublane packing
    n_nt = _cdiv(Np16, tile_n_max)                # number of node tiles (parallel axis)
    tile_n = _round_up(_cdiv(Np16, n_nt), 16)
    Np = n_nt * tile_n
    Ep = _round_up(E, tile_e)

    def pad2(a, r, c):
        out = jnp.zeros((r, c), a.dtype)
        return out.at[:a.shape[0], :a.shape[1]].set(a)

    # --- weights: de-interleave, fold complex structure (WB = M@WA, W*K = W*@K)
    # and the inverse output permutation into the columns; cast to bf16. -------
    w_lin_d = w_lin[:, perm]                                   # (Cin, C)
    WA = w_node.T[perm][:, perm]                               # (C, C) de-interleaved
    WB = jnp.concatenate([WA[C2:, :], -WA[:C2, :]], axis=0)    # M @ WA
    WAK = jnp.concatenate([WA[:, C2:], -WA[:, :C2]], axis=1)   # WA @ K
    WBK = jnp.concatenate([WB[:, C2:], -WB[:, :C2]], axis=1)   # WB @ K
    # fold inv_perm into the output columns -> kernel emits torch-interleaved order
    WA, WB, WAK, WBK = [W[:, inv_perm] for W in (WA, WB, WAK, WBK)]

    WA_p = pad2(WA, Cp, Cp).astype(jnp.bfloat16)
    WB_p = pad2(WB, Cp, Cp).astype(jnp.bfloat16)
    WAK_p = pad2(WAK, Cp, Cp).astype(jnp.bfloat16)
    WBK_p = pad2(WBK, Cp, Cp).astype(jnp.bfloat16)

    bias_vec = jnp.zeros((C,), jnp.float32) if bias is None else bias.astype(jnp.float32)
    bias_p = jnp.zeros((1, Cp), jnp.float32).at[0, :C].set(bias_vec)   # already interleaved

    # --- edge-linear hoisted out of the kernel (K=Cin would underfill the MXU) -
    h = (x.astype(jnp.float32) @ w_lin_d.astype(jnp.float32)).astype(jnp.bfloat16)
    hb_p = pad2(h, Ep, Cp)                                     # (Ep, Cp) bf16

    # --- incidences: re/im stacked per node tile for ONE fused matmul per step -
    bin_re_p = pad2(bin_re, Np, Ep)
    bin_im_p = pad2(bin_im, Np, Ep)
    binc = jnp.concatenate(
        [bin_re_p.reshape(n_nt, tile_n, Ep), bin_im_p.reshape(n_nt, tile_n, Ep)],
        axis=1).reshape(n_nt * 2 * tile_n, Ep).astype(jnp.bfloat16)

    boutT = jnp.concatenate(
        [pad2(bout_re.T, Ep, Np), pad2(bout_im.T, Ep, Np)],
        axis=1).astype(jnp.bfloat16)                           # (Ep, 2*Np)

    yyk3 = _eign_phase1(hb_p, binc, WA_p, WB_p, WAK_p, WBK_p,
                        tile_n=tile_n, tile_e=tile_e, vmem_limit=vmem_limit_bytes)
    yyk = yyk3.reshape(2 * Np, Cp)                             # rows [0,Np)=Y, [Np,2Np)=YK
    out_p = _eign_phase2(boutT, yyk, bias_p,
                         tile_e=tile_e, vmem_limit=vmem_limit_bytes)

    # output is already in torch-interleaved channel order; just strip padding
    return out_p[:E, :C]


# ----------------------------------------------------------------------------
# Pure-JAX reference (mirrors the torch forward with complex arithmetic; the
# bf16 quantization points of the kernel are mirrored so the comparison tests
# the kernel math rather than the declared precision choice).
# ----------------------------------------------------------------------------
def reference_forward(x, edge_index, is_directed, num_nodes, w_lin, w_node, bias,
                      q=1.0, signed_in=True, signed_out=True, normalize=True):
    E = x.shape[0]
    C = w_lin.shape[1]
    C2 = C // 2
    bin_re, bin_im, bout_re, bout_im = build_incidences(
        edge_index, is_directed, num_nodes, q, signed_in, signed_out, normalize)

    def q16(a):
        return a.astype(jnp.bfloat16).astype(jnp.float32)

    Bin = q16(bin_re) + 1j * q16(bin_im)
    Bout = q16(bout_re) + 1j * q16(bout_im)

    h = q16(x @ w_lin)                                         # (E, C) interleaved
    hc = h.reshape(E, C2, 2)
    hc = hc[..., 0] + 1j * hc[..., 1]
    xn = Bin @ hc                                              # (N, C/2) complex
    xn_real = q16(jnp.stack([xn.real, xn.imag], axis=-1).reshape(-1, C))
    y = q16(xn_real @ q16(w_node.T))
    yc = y.reshape(-1, C2, 2)
    yc = yc[..., 0] + 1j * yc[..., 1]
    out = Bout.conj().T @ yc                                   # (E, C/2) complex
    out_real = jnp.stack([out.real, out.imag], axis=-1).reshape(E, C)
    if bias is not None:
        out_real = out_real + bias
    return out_real.astype(jnp.float32)


# ----------------------------------------------------------------------------
if __name__ == "__main__":
    key = jax.random.PRNGKey(0)
    k_x, k_src, k_dst, k_dir, k_wl, k_wn = jax.random.split(key, 6)

    num_nodes = 64
    num_edges = 300          # padded to 512 -> 2 E-tiles with tile_e=256
    in_channels = 16
    out_channels = 32        # must be even
    q = 0.5                  # exercises both real and imaginary incidence parts
    signed_in = True
    signed_out = True        # -> bias is None (module default)

    # deterministic synthetic graph (no self loops)
    src = jax.random.randint(k_src, (num_edges,), 0, num_nodes)
    off = jax.random.randint(k_dst, (num_edges,), 1, num_nodes)
    dst = (src + off) % num_nodes
    edge_index = jnp.stack([src, dst], axis=0)
    is_directed = jax.random.bernoulli(k_dir, 0.5, (num_edges,))

    x = jax.random.normal(k_x, (num_edges, in_channels), jnp.float32)

    lim_lin = 1.0 / jnp.sqrt(in_channels)
    w_lin = jax.random.uniform(k_wl, (in_channels, out_channels), jnp.float32,
                               -lim_lin, lim_lin)              # = lin.weight.T
    lim_node = 1.0 / jnp.sqrt(out_channels)
    w_node = jax.random.uniform(k_wn, (out_channels, out_channels), jnp.float32,
                                -lim_node, lim_node)           # node Linear weight
    bias = None                                                # signed_out=True

    out = magnetic_edge_laplacian_conv_forward(
        x, edge_index, is_directed, num_nodes, w_lin, w_node, bias,
        q=q, signed_in=signed_in, signed_out=signed_out, normalize=True,
        tile_e=256, tile_n_max=32)   # small tiles to exercise both grid axes
    out = jax.block_until_ready(out)

    ref = reference_forward(
        x, edge_index, is_directed, num_nodes, w_lin, w_node, bias,
        q=q, signed_in=signed_in, signed_out=signed_out, normalize=True)
    ref = jax.block_until_ready(ref)

    assert out.shape == (num_edges, out_channels)
    max_err = float(jnp.max(jnp.abs(out - ref)))
    # bf16 quantization points are mirrored except A/B being quantized pre- vs
    # post-combine in the node transform -> tolerance covers that ~bf16-eps gap.
    assert max_err < 5e-2, max_err
    print("KERNEL_OK")
</pallas_src>

<mosaic_0001>
module attributes {stable_mosaic.version = 11 : i64} {
  func.func @_phase1_kernel(%arg0: i32, %arg1: i32, %arg2: memref<256x128xbf16, #tpu.memory_space<vmem>>, %arg3: memref<64x256xbf16, #tpu.memory_space<vmem>>, %arg4: memref<128x128xbf16, #tpu.memory_space<vmem>>, %arg5: memref<128x128xbf16, #tpu.memory_space<vmem>>, %arg6: memref<128x128xbf16, #tpu.memory_space<vmem>>, %arg7: memref<128x128xbf16, #tpu.memory_space<vmem>>, %arg8: memref<2x32x128xbf16, #tpu.memory_space<vmem>>, %arg9: memref<64x128xf32, #tpu.memory_space<vmem>>) attributes {dimension_semantics = [#tpu.dimension_semantics<parallel>, #tpu.dimension_semantics<arbitrary>], iteration_bounds = array<i64: 2, 2>, scalar_prefetch = 0 : i64, scratch_operands = 1 : i64, tpu.core_type = #tpu.core_type<tc>, window_params = [{transform_indices = @transform_0, window_bounds = array<i64: 256, 128>}, {transform_indices = @transform_1, window_bounds = array<i64: 64, 256>}, {pipeline_mode = #tpu.pipeline_mode<synchronous>, transform_indices = @transform_2, window_bounds = array<i64: 128, 128>}, {pipeline_mode = #tpu.pipeline_mode<synchronous>, transform_indices = @transform_3, window_bounds = array<i64: 128, 128>}, {pipeline_mode = #tpu.pipeline_mode<synchronous>, transform_indices = @transform_4, window_bounds = array<i64: 128, 128>}, {pipeline_mode = #tpu.pipeline_mode<synchronous>, transform_indices = @transform_5, window_bounds = array<i64: 128, 128>}, {transform_indices = @transform_6, window_bounds = array<i64: 2, 32, 128>}]} {
    %c0_i32 = arith.constant 0 : i32
    %0 = arith.cmpi eq, %arg1, %c0_i32 : i32
    %1 = arith.extui %0 : i1 to i32
    %c0_i32_0 = arith.constant 0 : i32
    %2 = arith.cmpi ne, %1, %c0_i32_0 : i32
    scf.if %2 {
      %cst_9 = arith.constant 0.000000e+00 : f32
      %12 = vector.broadcast %cst_9 : f32 to vector<64x128xf32>
      %c0_10 = arith.constant 0 : index
      %c0_11 = arith.constant 0 : index
      %13 = vector.load %arg9[%c0_10, %c0_11] : memref<64x128xf32, #tpu.memory_space<vmem>>, vector<64x128xf32>
      tpu.vector_store %arg9[%c0_10, %c0_11], %12 {strides = array<i32>} : memref<64x128xf32, #tpu.memory_space<vmem>>, vector<64x128xf32>,
    } else {
    }
    %c0 = arith.constant 0 : index
    %c0_1 = arith.constant 0 : index
    %3 = vector.load %arg9[%c0, %c0_1] : memref<64x128xf32, #tpu.memory_space<vmem>>, vector<64x128xf32>
    %c0_2 = arith.constant 0 : index
    %c0_3 = arith.constant 0 : index
    %4 = vector.load %arg3[%c0_2, %c0_3] : memref<64x256xbf16, #tpu.memory_space<vmem>>, vector<64x256xbf16>
    %c0_4 = arith.constant 0 : index
    %c0_5 = arith.constant 0 : index
    %5 = vector.load %arg2[%c0_4, %c0_5] : memref<256x128xbf16, #tpu.memory_space<vmem>>, vector<256x128xbf16>
    %cst = arith.constant dense<0.000000e+00> : vector<64x128xf32>
    %6 = tpu.matmul %4, %5, %cst {dimension_numbers = #tpu.dot_dimension_numbers<[1], [0], [0], [1], [0, 0, 1, 1], [], []>} : vector<64x256xbf16>, vector<256x128xbf16>, vector<64x128xf32> -> vector<64x128xf32>
    %7 = arith.addf %3, %6 : vector<64x128xf32>
    %c0_6 = arith.constant 0 : index
    %c0_7 = arith.constant 0 : index
    %8 = vector.load %arg9[%c0_6, %c0_7] : memref<64x128xf32, #tpu.memory_space<vmem>>, vector<64x128xf32>
    tpu.vector_store %arg9[%c0_6, %c0_7], %7 {strides = array<i32>} : memref<64x128xf32, #tpu.memory_space<vmem>>, vector<64x128xf32>,
    %c1_i32 = arith.constant 1 : i32
    %9 = arith.cmpi eq, %arg1, %c1_i32 : i32
    %10 = arith.extui %9 : i1 to i32
    %c0_i32_8 = arith.constant 0 : i32
    %11 = arith.cmpi ne, %10, %c0_i32_8 : i32
    scf.if %11 {
      %c0_9 = arith.constant 0 : index
      %c0_10 = arith.constant 0 : index
      %12 = vector.load %arg9[%c0_9, %c0_10] : memref<64x128xf32, #tpu.memory_space<vmem>>, vector<64x128xf32>
      %13 = vector.extract_strided_slice %12 {offsets = [0, 0], sizes = [32, 128], strides = [1, 1]} : vector<64x128xf32> to vector<32x128xf32>
      %14 = arith.truncf %13 : vector<32x128xf32> to vector<32x128xbf16>
      %15 = vector.extract_strided_slice %12 {offsets = [32, 0], sizes = [32, 128], strides = [1, 1]} : vector<64x128xf32> to vector<32x128xf32>
      %16 = arith.truncf %15 : vector<32x128xf32> to vector<32x128xbf16>
      %c0_11 = arith.constant 0 : index
      %c0_12 = arith.constant 0 : index
      %17 = vector.load %arg4[%c0_11, %c0_12] : memref<128x128xbf16, #tpu.memory_space<vmem>>, vector<128x128xbf16>
      %cst_13 = arith.constant dense<0.000000e+00> : vector<32x128xf32>
      %18 = tpu.matmul %14, %17, %cst_13 {dimension_numbers = #tpu.dot_dimension_numbers<[1], [0], [0], [1], [0, 0, 1, 1], [], []>} : vector<32x128xbf16>, vector<128x128xbf16>, vector<32x128xf32> -> vector<32x128xf32>
      %c0_14 = arith.constant 0 : index
      %c0_15 = arith.constant 0 : index
      %19 = vector.load %arg5[%c0_14, %c0_15] : memref<128x128xbf16, #tpu.memory_space<vmem>>, vector<128x128xbf16>
      %cst_16 = arith.constant dense<0.000000e+00> : vector<32x128xf32>
      %20 = tpu.matmul %16, %19, %cst_16 {dimension_numbers = #tpu.dot_dimension_numbers<[1], [0], [0], [1], [0, 0, 1, 1], [], []>} : vector<32x128xbf16>, vector<128x128xbf16>, vector<32x128xf32> -> vector<32x128xf32>
      %21 = arith.addf %18, %20 : vector<32x128xf32>
      %c0_17 = arith.constant 0 : index
      %c0_18 = arith.constant 0 : index
      %22 = vector.load %arg6[%c0_17, %c0_18] : memref<128x128xbf16, #tpu.memory_space<vmem>>, vector<128x128xbf16>
      %cst_19 = arith.constant dense<0.000000e+00> : vector<32x128xf32>
      %23 = tpu.matmul %14, %22, %cst_19 {dimension_numbers = #tpu.dot_dimension_numbers<[1], [0], [0], [1], [0, 0, 1, 1], [], []>} : vector<32x128xbf16>, vector<128x128xbf16>, vector<32x128xf32> -> vector<32x128xf32>
      %c0_20 = arith.constant 0 : index
      %c0_21 = arith.constant 0 : index
      %24 = vector.load %arg7[%c0_20, %c0_21] : memref<128x128xbf16, #tpu.memory_space<vmem>>, vector<128x128xbf16>
      %cst_22 = arith.constant dense<0.000000e+00> : vector<32x128xf32>
      %25 = tpu.matmul %16, %24, %cst_22 {dimension_numbers = #tpu.dot_dimension_numbers<[1], [0], [0], [1], [0, 0, 1, 1], [], []>} : vector<32x128xbf16>, vector<128x128xbf16>, vector<32x128xf32> -> vector<32x128xf32>
      %26 = arith.addf %23, %25 : vector<32x128xf32>
      %27 = arith.truncf %21 : vector<32x128xf32> to vector<32x128xbf16>
      %c0_23 = arith.constant 0 : index
      %c0_24 = arith.constant 0 : index
      %c0_25 = arith.constant 0 : index
      %28 = vector.load %arg8[%c0_23, %c0_24, %c0_25] : memref<2x32x128xbf16, #tpu.memory_space<vmem>>, vector<1x32x128xbf16>
      %29 = vector.shape_cast %28 : vector<1x32x128xbf16> to vector<32x128xbf16>
      %30 = vector.shape_cast %27 : vector<32x128xbf16> to vector<1x32x128xbf16>
      tpu.vector_store %arg8[%c0_23, %c0_24, %c0_25], %30 {strides = array<i32>} : memref<2x32x128xbf16, #tpu.memory_space<vmem>>, vector<1x32x128xbf16>,
      %31 = arith.truncf %26 : vector<32x128xf32> to vector<32x128xbf16>
      %c1 = arith.constant 1 : index
      %c0_26 = arith.constant 0 : index
      %c0_27 = arith.constant 0 : index
      %32 = vector.load %arg8[%c1, %c0_26, %c0_27] : memref<2x32x128xbf16, #tpu.memory_space<vmem>>, vector<1x32x128xbf16>
      %33 = vector.shape_cast %32 : vector<1x32x128xbf16> to vector<32x128xbf16>
      %34 = vector.shape_cast %31 : vector<32x128xbf16> to vector<1x32x128xbf16>
      tpu.vector_store %arg8[%c1, %c0_26, %c0_27], %34 {strides = array<i32>} : memref<2x32x128xbf16, #tpu.memory_space<vmem>>, vector<1x32x128xbf16>,
    } else {
    }
    return
  }
  func.func @transform_0(%arg0: i32, %arg1: i32) -> (i32, i32) {
    %c0_i32 = arith.constant 0 : i32
    %c0_i32_0 = arith.constant 0 : i32
    return %arg1, %c0_i32 : i32, i32
  }
  func.func @transform_1(%arg0: i32, %arg1: i32) -> (i32, i32) {
    %c0_i32 = arith.constant 0 : i32
    return %arg0, %arg1 : i32, i32
  }
  func.func @transform_2(%arg0: i32, %arg1: i32) -> (i32, i32) {
    %c0_i32 = arith.constant 0 : i32
    %c0_i32_0 = arith.constant 0 : i32
    %c0_i32_1 = arith.constant 0 : i32
    return %c0_i32, %c0_i32_0 : i32, i32
  }
  func.func @transform_3(%arg0: i32, %arg1: i32) -> (i32, i32) {
    %c0_i32 = arith.constant 0 : i32
    %c0_i32_0 = arith.constant 0 : i32
    %c0_i32_1 = arith.constant 0 : i32
    return %c0_i32, %c0_i32_0 : i32, i32
  }
  func.func @transform_4(%arg0: i32, %arg1: i32) -> (i32, i32) {
    %c0_i32 = arith.constant 0 : i32
    %c0_i32_0 = arith.constant 0 : i32
    %c0_i32_1 = arith.constant 0 : i32
    return %c0_i32, %c0_i32_0 : i32, i32
  }
  func.func @transform_5(%arg0: i32, %arg1: i32) -> (i32, i32) {
    %c0_i32 = arith.constant 0 : i32
    %c0_i32_0 = arith.constant 0 : i32
    %c0_i32_1 = arith.constant 0 : i32
    return %c0_i32, %c0_i32_0 : i32, i32
  }
  func.func @transform_6(%arg0: i32, %arg1: i32) -> (i32, i32, i32) {
    %c0_i32 = arith.constant 0 : i32
    %c0_i32_0 = arith.constant 0 : i32
    %c0_i32_1 = arith.constant 0 : i32
    return %c0_i32, %arg0, %c0_i32_0 : i32, i32, i32
  }
}

</mosaic_0001>

<llo_original>
// kernel: tpu_custom_call.1
$region0: #{tpu_custom_call.1}
  #allocation0 [shape = 'u32[]', space=smem, size = 0x4, offset = 0x4, fixed_abs, tag = 'smem constant byte address 0x4 - core index']
  #allocation1 [shape = 'u32[144,128]{1,0:T(1,128)}', space=vmem, size = 0x12000, scoped, tag = 'internal scratch']
  #allocation2 [shape = 'f32[64,128]{1,0:T(8,128)}', space=vmem, size = 0x8000, scoped, tag = 'scratch operand']
  #allocation15 [shape = 's32[]', space=sflag, size = 0x4, offset = 0, fixed_abs, tag = 'sflag constant byte address 0x0 - dummy sync flag']
  %s0 = inlined_call_operand.hbm [shape: bf16[512,128], index: 0, kind: input, shape index: {}]
  %s1 = inlined_call_operand.hbm [shape: bf16[128,512], index: 1, kind: input, shape index: {}]
  %s2 = inlined_call_operand.hbm [shape: bf16[128,128], index: 2, kind: input, shape index: {}]
  %s3 = inlined_call_operand.hbm [shape: bf16[128,128], index: 3, kind: input, shape index: {}]
  %s4 = inlined_call_operand.hbm [shape: bf16[128,128], index: 4, kind: input, shape index: {}]
  %s5 = inlined_call_operand.hbm [shape: bf16[128,128], index: 5, kind: input, shape index: {}]
  %s6 = inlined_call_operand.hbm [shape: bf16[2,64,128], index: 6, kind: output, shape index: {}]
  %s7 = sld [smem:[#allocation0]]
  $region89: #{tpu_custom_call.1} parent=0
    _
  %s9 = ssub.s32 1, %s7
  %s10 = scalar_select 0, %s9, %s7
  $region1: #{tpu_custom_call.1} parent=0
    #allocation3 [shape = 'u8[131072]{0}', space=vmem, size = 0x20000, scoped, tag = 'input window, operand 0']
    #allocation4 [shape = 's32[2]{0}', space=sflag, size = 0x8, scoped, tag = 'scoped memory for tpu_custom_call.1']
    #allocation5 [shape = 's32[2]{0}', space=sflag, size = 0x8, scoped, tag = 'scoped memory for tpu_custom_call.1']
    #allocation6 [shape = 'u8[65536]{0}', space=vmem, size = 0x10000, scoped, tag = 'input window, operand 1']
    #allocation7 [shape = 's32[2]{0}', space=sflag, size = 0x8, scoped, tag = 'scoped memory for tpu_custom_call.1']
    #allocation8 [shape = 'u8[32768]{0}', space=vmem, size = 0x8000, scoped, tag = 'input window, operand 2, single buffered']
    #allocation9 [shape = 'u8[32768]{0}', space=vmem, size = 0x8000, scoped, tag = 'input window, operand 3, single buffered']
    #allocation10 [shape = 's32[1]{0}', space=sflag, size = 0x4, scoped, tag = 'scoped memory for tpu_custom_call.1']
    #allocation11 [shape = 'u8[32768]{0}', space=vmem, size = 0x8000, scoped, tag = 'input window, operand 4, single buffered']
    #allocation12 [shape = 'u8[32768]{0}', space=vmem, size = 0x8000, scoped, tag = 'input window, operand 5, single buffered']
    #allocation13 [shape = 's32[1]{0}', space=sflag, size = 0x4, scoped, tag = 'scoped memory for tpu_custom_call.1']
    #allocation14 [shape = 'u8[32768]{0}', space=vmem, size = 0x8000, scoped, tag = 'output window, operand 0']
    %11 = vsyncpa [#allocation4], 0
    %s12 = scalar_lea.sflag [#allocation4], 1
    %13 = vsyncpa %s12, 0
    %14 = vsyncpa [#allocation7], 0
    %s15 = scalar_lea.sflag [#allocation7], 1
    %16 = vsyncpa %s15, 0
    %17 = vsyncpa [#allocation10], 0
    %18 = vsyncpa [#allocation13], 0
    %19 = vsyncpa [#allocation5], 0
    %s20 = scalar_lea.sflag [#allocation5], 1
    %21 = vsyncpa %s20, 0
    loop: start=0, step=1, limit=6
    $region2: #{tpu_custom_call.1} parent=1 // loop_pre_header
      _
    $region3: #{tpu_custom_call.1} parent=1 // loop_header
      %s23 = sphi 0, %s27
      %p24 = scmp.ge.s32.totalorder %s23, 6
      %s30 = sphi 0, %s42
      %s31 = sphi 0, %s38
      %s32 = sphi 0, %s30
      %s33 = sphi 0, %s31
      %s34 = sphi 0, %s32
      %s35 = sphi 0, %s33
      %s45 = sphi 0, %s47
      %s48 = sphi 0, %s45
      %s49 = sphi 0, %s48
      %s65 = sphi 0, %s49
      %s73 = sphi 0, %s75
      %s76 = sphi 0, %s73
      %s77 = sphi 0, %s76
      %s93 = sphi 0, %s77
      %s97 = sphi 0, %s97
      %s99 = sphi 0, %s97
      %s100 = sphi 0, %s99
      %s114 = sphi 0, %s100
      %s118 = sphi 0, %s118
      %s120 = sphi 0, %s118
      %s121 = sphi 0, %s120
      %s135 = sphi 0, %s121
      %s139 = sphi 0, %s139
      %s141 = sphi 0, %s139
      %s142 = sphi 0, %s141
      %s156 = sphi 0, %s142
      %s160 = sphi 0, %s160
      %s162 = sphi 0, %s160
      %s163 = sphi 0, %s162
      %s177 = sphi 0, %s163
      %s183 = sphi 0, %s185
      %s186 = sphi 0, %s183
      %s187 = sphi 0, %s186
      %s203 = sphi 0, %s187
    $region4: #{tpu_custom_call.1} parent=1 // loop_header_branch
      %26 = sbr.rel (%p24) target = $region8
    $region5: #{tpu_custom_call.1} parent=1 // loop_body
      %s28 = ssub.s32 %s23, 1
      %s29 = ssub.s32 %s23, 2
      %s36 = sadd.s32 1, %s31
      %p37 = scmp.ge.s32.totalorder %s36, 2
      %s38 = scalar_select %p37, 0, %s36
      %s39 = sadd.s32 1, %s30
      %s40 = scalar_select %p37, %s39, %s30
      %p41 = scmp.ge.s32.totalorder %s40, 2
      %s42 = scalar_select %p41, 0, %s40
      %s43 = ssub.s32 %s31, %s38
      %p44 = scmp.eq.s32.totalorder %s43, 0
      %s46 = sadd.s32 %s45, 1
      %s47 = scalar_select %p44, %s45, %s46
      %p50 = pneg %p44
      %p51 = scmp.eq.s32.totalorder %s23, 3
      %p52 = por %p50, %p51
      %p53 = scmp.ne.s32.totalorder %s45, %s48
      %p54 = scmp.eq.s32.totalorder %s23, 0
      %p55 = por %p53, %p54
      %p56 = scmp.ne.s32.totalorder %s45, %s48
      %p57 = scmp.eq.s32.totalorder %s28, 3
      %p58 = por %p56, %p57
      %p59 = scmp.ne.s32.totalorder %s48, %s49
      %p60 = scmp.eq.s32.totalorder %s28, 0
      %p61 = por %p59, %p60
      %p62 = scmp.ne.s32.totalorder %s48, %s49
      %p63 = scmp.eq.s32.totalorder %s29, 3
      %p64 = por %p62, %p63
      %p66 = scmp.ne.s32.totalorder %s49, %s65
      %p67 = scmp.eq.s32.totalorder %s29, 0
      %p68 = por %p66, %p67
      %s69 = ssub.s32 %s30, %s42
      %s70 = ssub.s32 %s31, %s38
      %s71 = sor.u32 %s69, %s70
      %p72 = scmp.eq.s32.totalorder %s71, 0
      %s74 = sadd.s32 %s73, 1
      %s75 = scalar_select %p72, %s73, %s74
      %p78 = pneg %p72
      %p79 = scmp.eq.s32.totalorder %s23, 3
      %p80 = por %p78, %p79
      %p81 = scmp.ne.s32.totalorder %s73, %s76
      %p82 = scmp.eq.s32.totalorder %s23, 0
      %p83 = por %p81, %p82
      %p84 = scmp.ne.s32.totalorder %s73, %s76
      %p85 = scmp.eq.s32.totalorder %s28, 3
      %p86 = por %p84, %p85
      %p87 = scmp.ne.s32.totalorder %s76, %s77
      %p88 = scmp.eq.s32.totalorder %s28, 0
      %p89 = por %p87, %p88
      %p90 = scmp.ne.s32.totalorder %s76, %s77
      %p91 = scmp.eq.s32.totalorder %s29, 3
      %p92 = por %p90, %p91
      %p94 = scmp.ne.s32.totalorder %s77, %s93
      %p95 = scmp.eq.s32.totalorder %s29, 0
      %p96 = por %p94, %p95
      %s98 = sadd.s32 %s97, 1
      %p101 = scmp.eq.s32.totalorder %s23, 3
      %p102 = scmp.ne.s32.totalorder %s97, %s99
      %p103 = scmp.eq.s32.totalorder %s23, 0
      %p104 = por %p102, %p103
      %p105 = scmp.ne.s32.totalorder %s97, %s99
      %p106 = scmp.eq.s32.totalorder %s28, 3
      %p107 = por %p105, %p106
      %p108 = scmp.ne.s32.totalorder %s99, %s100
      %p109 = scmp.eq.s32.totalorder %s28, 0
      %p110 = por %p108, %p109
      %p111 = scmp.ne.s32.totalorder %s99, %s100
      %p112 = scmp.eq.s32.totalorder %s29, 3
      %p113 = por %p111, %p112
      %p115 = scmp.ne.s32.totalorder %s100, %s114
      %p116 = scmp.eq.s32.totalorder %s29, 0
      %p117 = por %p115, %p116
      %s119 = sadd.s32 %s118, 1
      %p122 = scmp.eq.s32.totalorder %s23, 3
      %p123 = scmp.ne.s32.totalorder %s118, %s120
      %p124 = scmp.eq.s32.totalorder %s23, 0
      %p125 = por %p123, %p124
      %p126 = scmp.ne.s32.totalorder %s118, %s120
      %p127 = scmp.eq.s32.totalorder %s28, 3
      %p128 = por %p126, %p127
      %p129 = scmp.ne.s32.totalorder %s120, %s121
      %p130 = scmp.eq.s32.totalorder %s28, 0
      %p131 = por %p129, %p130
      %p132 = scmp.ne.s32.totalorder %s120, %s121
      %p133 = scmp.eq.s32.totalorder %s29, 3
      %p134 = por %p132, %p133
      %p136 = scmp.ne.s32.totalorder %s121, %s135
      %p137 = scmp.eq.s32.totalorder %s29, 0
      %p138 = por %p136, %p137
      %s140 = sadd.s32 %s139, 1
      %p143 = scmp.eq.s32.totalorder %s23, 3
      %p144 = scmp.ne.s32.totalorder %s139, %s141
      %p145 = scmp.eq.s32.totalorder %s23, 0
      %p146 = por %p144, %p145
      %p147 = scmp.ne.s32.totalorder %s139, %s141
      %p148 = scmp.eq.s32.totalorder %s28, 3
      %p149 = por %p147, %p148
      %p150 = scmp.ne.s32.totalorder %s141, %s142
      %p151 = scmp.eq.s32.totalorder %s28, 0
      %p152 = por %p150, %p151
      %p153 = scmp.ne.s32.totalorder %s141, %s142
      %p154 = scmp.eq.s32.totalorder %s29, 3
      %p155 = por %p153, %p154
      %p157 = scmp.ne.s32.totalorder %s142, %s156
      %p158 = scmp.eq.s32.totalorder %s29, 0
      %p159 = por %p157, %p158
      %s161 = sadd.s32 %s160, 1
      %p164 = scmp.eq.s32.totalorder %s23, 3
      %p165 = scmp.ne.s32.totalorder %s160, %s162
      %p166 = scmp.eq.s32.totalorder %s23, 0
      %p167 = por %p165, %p166
      %p168 = scmp.ne.s32.totalorder %s160, %s162
      %p169 = scmp.eq.s32.totalorder %s28, 3
      %p170 = por %p168, %p169
      %p171 = scmp.ne.s32.totalorder %s162, %s163
      %p172 = scmp.eq.s32.totalorder %s28, 0
      %p173 = por %p171, %p172
      %p174 = scmp.ne.s32.totalorder %s162, %s163
      %p175 = scmp.eq.s32.totalorder %s29, 3
      %p176 = por %p174, %p175
      %p178 = scmp.ne.s32.totalorder %s163, %s177
      %p179 = scmp.eq.s32.totalorder %s29, 0
      %p180 = por %p178, %p179
      %s181 = ssub.s32 %s30, %s42
      %p182 = scmp.eq.s32.totalorder %s181, 0
      %s184 = sadd.s32 %s183, 1
      %s185 = scalar_select %p182, %s183, %s184
      %p188 = pneg %p182
      %p189 = scmp.eq.s32.totalorder %s23, 3
      %p190 = por %p188, %p189
      %p191 = scmp.ne.s32.totalorder %s183, %s186
      %p192 = scmp.eq.s32.totalorder %s23, 0
      %p193 = por %p191, %p192
      %p194 = scmp.ne.s32.totalorder %s183, %s186
      %p195 = scmp.eq.s32.totalorder %s28, 3
      %p196 = por %p194, %p195
      %p197 = scmp.ne.s32.totalorder %s186, %s187
      %p198 = scmp.eq.s32.totalorder %s28, 0
      %p199 = por %p197, %p198
      %p200 = scmp.ne.s32.totalorder %s186, %s187
      %p201 = scmp.eq.s32.totalorder %s29, 3
      %p202 = por %p200, %p201
      %p204 = scmp.ne.s32.totalorder %s187, %s203
      %p205 = scmp.eq.s32.totalorder %s29, 0
      %p206 = por %p204, %p205
      %p207 = scmp.le.s32.totalorder 1, %s23
      %p208 = scmp.lt.s32.totalorder %s23, 5
      %p209 = pnand %p207, %p208
      %p210 = pneg %p209
      // Predicated region
      $region9: #{tpu_custom_call.1} parent=5 // pred_check
        _
      $region10: #{tpu_custom_call.1} parent=5 // pred_check_branch
        %212 = sbr.rel (%p209) target = $region12
      $region11: #{tpu_custom_call.1} parent=5 // pred_region
        %s213 = ssub.s32 %s23, 1
        // Predicated region
        $region13: #{tpu_custom_call.1} parent=11 // pred_check
          %p214 = pneg %p110
        $region14: #{tpu_custom_call.1} parent=11 // pred_check_branch
          %216 = sbr.rel (%p214) target = $region16
        $region15: #{tpu_custom_call.1} parent=11 // pred_region
          %s218 = ssub.s32 1024, 1024
          %219 = vsyncadd [#allocation7], %s218
          %s220 = sshll.u32 [#allocation8], 4
          %s221 = int_to_ptr.vmem [resolvable:$true] %s220
          %226 = dma.hbm_to_vmem [thread:$0]  %s2, 1024, %s221, [#allocation7], 64, 64, 4
        $region16: #{tpu_custom_call.1} parent=11 // pred_fallthru
          _
        // Predicated region
        $region17: #{tpu_custom_call.1} parent=11 // pred_check
          %p227 = pneg %p131
        $region18: #{tpu_custom_call.1} parent=11 // pred_check_branch
          %229 = sbr.rel (%p227) target = $region20
        $region19: #{tpu_custom_call.1} parent=11 // pred_region
          %s231 = ssub.s32 1024, 1024
          %232 = vsyncadd [#allocation10], %s231
          %s233 = sshll.u32 [#allocation9], 4
          %s234 = int_to_ptr.vmem [resolvable:$true] %s233
          %239 = dma.hbm_to_vmem [thread:$0]  %s3, 1024, %s234, [#allocation10], 64, 64, 4
        $region20: #{tpu_custom_call.1} parent=11 // pred_fallthru
          _
        // Predicated region
        $region21: #{tpu_custom_call.1} parent=11 // pred_check
          %p240 = pneg %p152
        $region22: #{tpu_custom_call.1} parent=11 // pred_check_branch
          %242 = sbr.rel (%p240) target = $region24
        $region23: #{tpu_custom_call.1} parent=11 // pred_region
          %s244 = ssub.s32 1024, 1024
          %245 = vsyncadd [#allocation10], %s244
          %s246 = sshll.u32 [#allocation11], 4
          %s247 = int_to_ptr.vmem [resolvable:$true] %s246
          %252 = dma.hbm_to_vmem [thread:$0]  %s4, 1024, %s247, [#allocation10], 64, 64, 4
        $region24: #{tpu_custom_call.1} parent=11 // pred_fallthru
          _
        // Predicated region
        $region25: #{tpu_custom_call.1} parent=11 // pred_check
          %p253 = pneg %p173
        $region26: #{tpu_custom_call.1} parent=11 // pred_check_branch
          %255 = sbr.rel (%p253) target = $region28
        $region27: #{tpu_custom_call.1} parent=11 // pred_region
          %s257 = ssub.s32 1024, 1024
          %258 = vsyncadd [#allocation13], %s257
          %s259 = sshll.u32 [#allocation12], 4
          %s260 = int_to_ptr.vmem [resolvable:$true] %s259
          %265 = dma.hbm_to_vmem [thread:$0]  %s5, 1024, %s260, [#allocation13], 64, 64, 4
        $region28: #{tpu_custom_call.1} parent=11 // pred_fallthru
          _
      $region12: #{tpu_custom_call.1} parent=5 // pred_fallthru
        _
      %p266 = scmp.lt.s32.totalorder %s23, 4
      // Predicated region
      $region29: #{tpu_custom_call.1} parent=5 // pred_check
        %p267 = pneg %p266
      $region30: #{tpu_custom_call.1} parent=5 // pred_check_branch
        %269 = sbr.rel (%p267) target = $region32
      $region31: #{tpu_custom_call.1} parent=5 // pred_region
        // Predicated region
        $region33: #{tpu_custom_call.1} parent=31 // pred_check
          %p270 = pneg %p55
        $region34: #{tpu_custom_call.1} parent=31 // pred_check_branch
          %272 = sbr.rel (%p270) target = $region36
        $region35: #{tpu_custom_call.1} parent=31 // pred_region
          %s273 = sand.u32 %s45, 1
          %s274 = scalar_lea.sflag [#allocation4], %s273
          %s275 = sand.u32 %s45, 1
          %s276 = smul.addr %s275, 128
          %s277 = scalar_lea.vmem [#allocation3], %s276
          %s278 = smul.u32 32, %s31
          %s280 = ssub.s32 2048, 2048
          %281 = vsyncadd %s274, %s280
          %s282 = smul.addr %s278, 64
          %s283 = scalar_lea.hbm %s0, %s282
          %s284 = sshll.u32 %s277, 4
          %s285 = int_to_ptr.vmem [resolvable:$true] %s284
          %290 = dma.hbm_to_vmem [thread:$0]  %s283, 2048, %s285, %s274, 64, 64, 4
        $region36: #{tpu_custom_call.1} parent=31 // pred_fallthru
          _
        // Predicated region
        $region37: #{tpu_custom_call.1} parent=31 // pred_check
          %p291 = pneg %p83
        $region38: #{tpu_custom_call.1} parent=31 // pred_check_branch
          %293 = sbr.rel (%p291) target = $region40
        $region39: #{tpu_custom_call.1} parent=31 // pred_region
          %s294 = sand.u32 %s23, 1
          %s295 = scalar_lea.sflag [#allocation7], %s294
          %s296 = sand.u32 %s73, 1
          %s297 = smul.addr %s296, 64
          %s298 = scalar_lea.vmem [#allocation6], %s297
          %s299 = smul.u32 8, %s30
          %s300 = smul.u32 2, %s31
          %s302 = ssub.s32 1024, 1024
          %303 = vsyncadd %s295, %s302
          %s304 = smul.addr %s299, 4
          %s305 = sadd.s32 %s300, %s304
          %s306 = smul.addr %s305, 64
          %s307 = scalar_lea.hbm %s1, %s306
          %s308 = sshll.u32 %s298, 4
          %s309 = int_to_ptr.vmem [resolvable:$true] %s308
          %314 = dma.hbm_to_vmem [thread:$0]  %s307, 1024, %s309, %s295, 256, 128, 8
        $region40: #{tpu_custom_call.1} parent=31 // pred_fallthru
          _
      $region32: #{tpu_custom_call.1} parent=5 // pred_fallthru
        _
      %p315 = scmp.le.s32.totalorder 1, %s23
      %p316 = scmp.lt.s32.totalorder %s23, 5
      %p317 = pnand %p315, %p316
      %p318 = pneg %p317
      // Predicated region
      $region41: #{tpu_custom_call.1} parent=5 // pred_check
        _
      $region42: #{tpu_custom_call.1} parent=5 // pred_check_branch
        %320 = sbr.rel (%p317) target = $region44
      $region43: #{tpu_custom_call.1} parent=5 // pred_region
        %s321 = ssub.s32 %s23, 1
        %s322 = sand.u32 %s48, 1
        %s323 = scalar_lea.sflag [#allocation4], %s322
        %s324 = sand.u32 %s48, 1
        %s325 = smul.addr %s324, 128
        %s326 = scalar_lea.vmem [#allocation3], %s325
        // Predicated region
        $region45: #{tpu_custom_call.1} parent=43 // pred_check
          %p327 = pneg %p61
        $region46: #{tpu_custom_call.1} parent=43 // pred_check_branch
          %329 = sbr.rel (%p327) target = $region48
        $region47: #{tpu_custom_call.1} parent=43 // pred_region
          %330 = dma.done %s323, 2048
        $region48: #{tpu_custom_call.1} parent=43 // pred_fallthru
          _
        %s331 = sand.u32 %s28, 1
        %s332 = scalar_lea.sflag [#allocation7], %s331
        %s333 = sand.u32 %s76, 1
        %s334 = smul.addr %s333, 64
        %s335 = scalar_lea.vmem [#allocation6], %s334
        // Predicated region
        $region49: #{tpu_custom_call.1} parent=43 // pred_check
          %p336 = pneg %p89
        $region50: #{tpu_custom_call.1} parent=43 // pred_check_branch
          %338 = sbr.rel (%p336) target = $region52
        $region51: #{tpu_custom_call.1} parent=43 // pred_region
          %339 = dma.done %s332, 1024
        $region52: #{tpu_custom_call.1} parent=43 // pred_fallthru
          _
        // Predicated region
        $region53: #{tpu_custom_call.1} parent=43 // pred_check
          %p340 = pneg %p110
        $region54: #{tpu_custom_call.1} parent=43 // pred_check_branch
          %342 = sbr.rel (%p340) target = $region56
        $region55: #{tpu_custom_call.1} parent=43 // pred_region
          %343 = dma.done [#allocation7], 1024
        $region56: #{tpu_custom_call.1} parent=43 // pred_fallthru
          _
        // Predicated region
        $region57: #{tpu_custom_call.1} parent=43 // pred_check
          %p344 = pneg %p131
        $region58: #{tpu_custom_call.1} parent=43 // pred_check_branch
          %346 = sbr.rel (%p344) target = $region60
        $region59: #{tpu_custom_call.1} parent=43 // pred_region
          %347 = dma.done [#allocation10], 1024
        $region60: #{tpu_custom_call.1} parent=43 // pred_fallthru
          _
        // Predicated region
        $region61: #{tpu_custom_call.1} parent=43 // pred_check
          %p348 = pneg %p152
        $region62: #{tpu_custom_call.1} parent=43 // pred_check_branch
          %350 = sbr.rel (%p348) target = $region64
        $region63: #{tpu_custom_call.1} parent=43 // pred_region
          %351 = dma.done [#allocation10], 1024
        $region64: #{tpu_custom_call.1} parent=43 // pred_fallthru
          _
        // Predicated region
        $region65: #{tpu_custom_call.1} parent=43 // pred_check
          %p352 = pneg %p173
        $region66: #{tpu_custom_call.1} parent=43 // pred_check_branch
          %354 = sbr.rel (%p352) target = $region68
        $region67: #{tpu_custom_call.1} parent=43 // pred_region
          %355 = dma.done [#allocation13], 1024
        $region68: #{tpu_custom_call.1} parent=43 // pred_fallthru
          _
        %s356 = sand.u32 %s48, 1
        %s357 = scalar_lea.sflag [#allocation4], %s356
        %s358 = sand.u32 %s48, 1
        %s359 = smul.addr %s358, 128
        %s360 = scalar_lea.vmem [#allocation3], %s359
        %p361 = pneg %p61
        %p362 = pneg %p58
        %s363 = sand.u32 %s28, 1
        %s364 = scalar_lea.sflag [#allocation7], %s363
        %s365 = sand.u32 %s76, 1
        %s366 = smul.addr %s365, 64
        %s367 = scalar_lea.vmem [#allocation6], %s366
        %p368 = pneg %p89
        %p369 = pneg %p86
        %p370 = pneg %p110
        %p371 = pneg %p107
        %p372 = pneg %p131
        %p373 = pneg %p128
        %p374 = pneg %p152
        %p375 = pneg %p149
        %p376 = pneg %p173
        %p377 = pneg %p170
        %p378 = pneg %p199
        %p379 = pneg %p196
        %s380 = sand.u32 %s186, 1
        %s381 = scalar_lea.sflag [#allocation5], %s380
        %s382 = sand.u32 %s186, 1
        %s383 = smul.addr %s382, 32
        %s384 = scalar_lea.vmem [#allocation14], %s383
        %s385 = smul.u32 32, %s33
        %s386 = smul.u32 8, %s32
        %s387 = smul.u32 2, %s33
        %s388 = smul.u32 4, %s32
        %p390 = scmp.eq.s32.totalorder %s33, 0
        // Predicated region
        $region69: #{tpu_custom_call.1} parent=43 // pred_check
          %p391 = pneg %p390
        $region70: #{tpu_custom_call.1} parent=43 // pred_check_branch
          %393 = sbr.rel (%p391) target = $region72
        $region71: #{tpu_custom_call.1} parent=43 // pred_region
          %394 = vst [vmem:[#allocation2] sm:$0xff] 0.0
          %395 = vst [vmem:[#allocation2 + $0x8] sm:$0xff] 0.0
          %396 = vst [vmem:[#allocation2 + $0x10] sm:$0xff] 0.0
          %397 = vst [vmem:[#allocation2 + $0x18] sm:$0xff] 0.0
          %398 = vst [vmem:[#allocation2 + $0x20] sm:$0xff] 0.0
          %399 = vst [vmem:[#allocation2 + $0x28] sm:$0xff] 0.0
          %400 = vst [vmem:[#allocation2 + $0x30] sm:$0xff] 0.0
          %401 = vst [vmem:[#allocation2 + $0x38] sm:$0xff] 0.0
        $region72: #{tpu_custom_call.1} parent=43 // pred_fallthru
          _
        %v402 = vld [vmem:[#allocation2] sm:$0xff]
        %v403 = vld [vmem:[#allocation2 + $0x8] sm:$0xff]
        %v404 = vld [vmem:[#allocation2 + $0x10] sm:$0xff]
        %v405 = vld [vmem:[#allocation2 + $0x18] sm:$0xff]
        %v406 = vld [vmem:[#allocation2 + $0x20] sm:$0xff]
        %v407 = vld [vmem:[#allocation2 + $0x28] sm:$0xff]
        %v408 = vld [vmem:[#allocation2 + $0x30] sm:$0xff]
        %v409 = vld [vmem:[#allocation2 + $0x38] sm:$0xff]
        %v410 = vld [vmem:[%s335] sm:$0xff]
        %v411 = vld [vmem:[%s335 + $0x8] sm:$0xff]
        %v412 = vld [vmem:[%s335 + $0x10] sm:$0xff]
        %v413 = vld [vmem:[%s335 + $0x18] sm:$0xff]
        %v414 = vld [vmem:[%s335 + $0x20] sm:$0xff]
        %v415 = vld [vmem:[%s335 + $0x28] sm:$0xff]
        %v416 = vld [vmem:[%s335 + $0x30] sm:$0xff]
        %v417 = vld [vmem:[%s335 + $0x38] sm:$0xff]
        %v418 = vld [vmem:[%s326] sm:$0xf]
        %v419 = vld [vmem:[%s326 + $0x4] sm:$0xf]
        %v420 = vld [vmem:[%s326 + $0x8] sm:$0xf]
        %v421 = vld [vmem:[%s326 + $0xc] sm:$0xf]
        %v422 = vld [vmem:[%s326 + $0x10] sm:$0xf]
        %v423 = vld [vmem:[%s326 + $0x14] sm:$0xf]
        %v424 = vld [vmem:[%s326 + $0x18] sm:$0xf]
        %v425 = vld [vmem:[%s326 + $0x1c] sm:$0xf]
        %v426 = vld [vmem:[%s326 + $0x20] sm:$0xf]
        %v427 = vld [vmem:[%s326 + $0x24] sm:$0xf]
        %v428 = vld [vmem:[%s326 + $0x28] sm:$0xf]
        %v429 = vld [vmem:[%s326 + $0x2c] sm:$0xf]
        %v430 = vld [vmem:[%s326 + $0x30] sm:$0xf]
        %v431 = vld [vmem:[%s326 + $0x34] sm:$0xf]
        %v432 = vld [vmem:[%s326 + $0x38] sm:$0xf]
        %v433 = vld [vmem:[%s326 + $0x3c] sm:$0xf]
        %v434 = vld [vmem:[%s326 + $0x40] sm:$0xf]
        %v435 = vld [vmem:[%s326 + $0x44] sm:$0xf]
        %v436 = vld [vmem:[%s326 + $0x48] sm:$0xf]
        %v437 = vld [vmem:[%s326 + $0x4c] sm:$0xf]
        %v438 = vld [vmem:[%s326 + $0x50] sm:$0xf]
        %v439 = vld [vmem:[%s326 + $0x54] sm:$0xf]
        %v440 = vld [vmem:[%s326 + $0x58] sm:$0xf]
        %v441 = vld [vmem:[%s326 + $0x5c] sm:$0xf]
        %v442 = vld [vmem:[%s326 + $0x60] sm:$0xf]
        %v443 = vld [vmem:[%s326 + $0x64] sm:$0xf]
        %v444 = vld [vmem:[%s326 + $0x68] sm:$0xf]
        %v445 = vld [vmem:[%s326 + $0x6c] sm:$0xf]
        %v446 = vld [vmem:[%s326 + $0x70] sm:$0xf]
        %v447 = vld [vmem:[%s326 + $0x74] sm:$0xf]
        %v448 = vld [vmem:[%s326 + $0x78] sm:$0xf]
        %v449 = vld [vmem:[%s326 + $0x7c] sm:$0xf]
        %v458 = vunpack.c.l.b16 %v410
        %v459 = vunpack.c.h.b16 %v410
        %v460 = vunpack.c.l.b16 %v411
        %v461 = vunpack.c.h.b16 %v411
        %v462 = vunpack.c.l.b16 %v412
        %v463 = vunpack.c.h.b16 %v412
        %v464 = vunpack.c.l.b16 %v413
        %v465 = vunpack.c.h.b16 %v413
        %v466 = vunpack.c.l.b16 %v414
        %v467 = vunpack.c.h.b16 %v414
        %v468 = vunpack.c.l.b16 %v415
        %v469 = vunpack.c.h.b16 %v415
        %v470 = vunpack.c.l.b16 %v416
        %v471 = vunpack.c.h.b16 %v416
        %v472 = vunpack.c.l.b16 %v417
        %v473 = vunpack.c.h.b16 %v417
        %v474 = vpack.c.b16 %v460, %v458
        %v475 = vpack.c.b16 %v461, %v459
        %v476 = vpack.c.b16 %v464, %v462
        %v477 = vpack.c.b16 %v465, %v463
        %v478 = vpack.c.b16 %v468, %v466
        %v479 = vpack.c.b16 %v469, %v467
        %v480 = vpack.c.b16 %v472, %v470
        %v481 = vpack.c.b16 %v473, %v471
        %v522 = vunpack.c.l.b16 %v418
        %v523 = vunpack.c.l.b16 %v419
        %v524 = vunpack.c.l.b16 %v420
        %v525 = vunpack.c.l.b16 %v421
        %v526 = vunpack.c.l.b16 %v422
        %v527 = vunpack.c.l.b16 %v423
        %v528 = vunpack.c.l.b16 %v424
        %v529 = vunpack.c.l.b16 %v425
        %v530 = vunpack.c.l.b16 %v426
        %v531 = vunpack.c.l.b16 %v427
        %v532 = vunpack.c.l.b16 %v428
        %v533 = vunpack.c.l.b16 %v429
        %v534 = vunpack.c.l.b16 %v430
        %v535 = vunpack.c.l.b16 %v431
        %v536 = vunpack.c.l.b16 %v432
        %v537 = vunpack.c.l.b16 %v433
        %v538 = vunpack.c.l.b16 %v434
        %v539 = vunpack.c.l.b16 %v435
        %v540 = vunpack.c.l.b16 %v436
        %v541 = vunpack.c.l.b16 %v437
        %v542 = vunpack.c.l.b16 %v438
        %v543 = vunpack.c.l.b16 %v439
        %v544 = vunpack.c.l.b16 %v440
        %v545 = vunpack.c.l.b16 %v441
        %v546 = vunpack.c.l.b16 %v442
        %v547 = vunpack.c.l.b16 %v443
        %v548 = vunpack.c.l.b16 %v444
        %v549 = vunpack.c.l.b16 %v445
        %v550 = vunpack.c.l.b16 %v446
        %v551 = vunpack.c.l.b16 %v447
        %v552 = vunpack.c.l.b16 %v448
        %v553 = vunpack.c.l.b16 %v449
        %v554 = vpack.c.b16 %v523, %v522
        %v555 = vpack.c.b16 %v525, %v524
        %v556 = vpack.c.b16 %v527, %v526
        %v557 = vpack.c.b16 %v529, %v528
        %v558 = vpack.c.b16 %v531, %v530
        %v559 = vpack.c.b16 %v533, %v532
        %v560 = vpack.c.b16 %v535, %v534
        %v561 = vpack.c.b16 %v537, %v536
        %v562 = vpack.c.b16 %v539, %v538
        %v563 = vpack.c.b16 %v541, %v540
        %v564 = vpack.c.b16 %v543, %v542
        %v565 = vpack.c.b16 %v545, %v544
        %v566 = vpack.c.b16 %v547, %v546
        %v567 = vpack.c.b16 %v549, %v548
        %v568 = vpack.c.b16 %v551, %v550
        %v569 = vpack.c.b16 %v553, %v552
        %586 = vmatprep.subr.bf16.mxu0 0
        %587 = vmatpush1.bf16.msra.mxu0 %v554
        %588 = vmatprep.subr.bf16.mxu0 0
        %589 = vmatpush1.bf16.msra.mxu0 %v555
        %590 = vmatprep.subr.bf16.mxu0 0
        %591 = vmatpush1.bf16.msra.mxu0 %v556
        %592 = vmatprep.subr.bf16.mxu0 0
        %593 = vmatpush1.bf16.msra.mxu0 %v557
        %594 = vmatprep.subr.bf16.mxu0 0
        %595 = vmatpush1.bf16.msra.mxu0 %v558
        %596 = vmatprep.subr.bf16.mxu0 0
        %597 = vmatpush1.bf16.msra.mxu0 %v559
        %598 = vmatprep.subr.bf16.mxu0 0
        %599 = vmatpush1.bf16.msra.mxu0 %v560
        %600 = vmatprep.subr.bf16.mxu0 0
        %601 = vmatpush1.bf16.msra.mxu0 %v561
        %602 = vmatprep.subr.bf16.mxu0 0
        %603 = vmatpush1.bf16.msra.mxu0 %v562
        %604 = vmatprep.subr.bf16.mxu0 0
        %605 = vmatpush1.bf16.msra.mxu0 %v563
        %606 = vmatprep.subr.bf16.mxu0 0
        %607 = vmatpush1.bf16.msra.mxu0 %v564
        %608 = vmatprep.subr.bf16.mxu0 0
        %609 = vmatpush1.bf16.msra.mxu0 %v565
        %610 = vmatprep.subr.bf16.mxu0 0
        %611 = vmatpush1.bf16.msra.mxu0 %v566
        %612 = vmatprep.subr.bf16.mxu0 0
        %613 = vmatpush1.bf16.msra.mxu0 %v567
        %614 = vmatprep.subr.bf16.mxu0 0
        %615 = vmatpush1.bf16.msra.mxu0 %v568
        %616 = vmatprep.subr.bf16.mxu0 0
        %617 = vmatpush1.bf16.msra.mxu0 %v569
        %618 = vmatprep.mubr.bf16.mxu0 %v475
        %619 = vmatmul.mubr.bf16.gmra.mrb[0].mxu0 %v474
        %v620 = vpop.f32.mrb[0].mxu0
        %v621 = vadd.f32 0.0, %v620
        %v622 = vpop.f32.mrb[0].mxu0
        %v623 = vpop.f32.mrb[0].mxu0
        %v624 = vadd.f32 0.0, %v623
        %v625 = vpop.f32.mrb[0].mxu0
        %626 = vmatprep.mubr.bf16.mxu0 %v477
        %627 = vmatmul.mubr.bf16.gmra.mrb[0].mxu0 %v476
        %v628 = vpop.f32.mrb[0].mxu0
        %v629 = vadd.f32 0.0, %v628
        %v630 = vpop.f32.mrb[0].mxu0
        %v631 = vpop.f32.mrb[0].mxu0
        %v632 = vadd.f32 0.0, %v631
        %v633 = vpop.f32.mrb[0].mxu0
        %634 = vmatprep.mubr.bf16.mxu0 %v479
        %635 = vmatmul.mubr.bf16.gmra.mrb[0].mxu0 %v478
        %v636 = vpop.f32.mrb[0].mxu0
        %v637 = vadd.f32 0.0, %v636
        %v638 = vpop.f32.mrb[0].mxu0
        %v639 = vpop.f32.mrb[0].mxu0
        %v640 = vadd.f32 0.0, %v639
        %v641 = vpop.f32.mrb[0].mxu0
        %642 = vmatprep.mubr.bf16.mxu0 %v481
        %643 = vmatmul.mubr.bf16.gmra.mrb[0].mxu0 %v480
        %v644 = vpop.f32.mrb[0].mxu0
        %v645 = vadd.f32 0.0, %v644
        %v646 = vpop.f32.mrb[0].mxu0
        %v647 = vpop.f32.mrb[0].mxu0
        %v648 = vadd.f32 0.0, %v647
        %v649 = vpop.f32.mrb[0].mxu0
        %650 = vdwg.mxu0
        %v651 = vadd.f32 %v402, %v621
        %v652 = vadd.f32 %v403, %v624
        %v653 = vadd.f32 %v404, %v629
        %v654 = vadd.f32 %v405, %v632
        %v655 = vadd.f32 %v406, %v637
        %v656 = vadd.f32 %v407, %v640
        %v657 = vadd.f32 %v408, %v645
        %v658 = vadd.f32 %v409, %v648
        %659 = vst [vmem:[#allocation2] sm:$0xff] %v651
        %660 = vst [vmem:[#allocation2 + $0x8] sm:$0xff] %v652
        %661 = vst [vmem:[#allocation2 + $0x10] sm:$0xff] %v653
        %662 = vst [vmem:[#allocation2 + $0x18] sm:$0xff] %v654
        %663 = vst [vmem:[#allocation2 + $0x20] sm:$0xff] %v655
        %664 = vst [vmem:[#allocation2 + $0x28] sm:$0xff] %v656
        %665 = vst [vmem:[#allocation2 + $0x30] sm:$0xff] %v657
        %666 = vst [vmem:[#allocation2 + $0x38] sm:$0xff] %v658
        %p667 = scmp.eq.s32.totalorder %s33, 1
        // Predicated region
        $region73: #{tpu_custom_call.1} parent=43 // pred_check
          %p668 = pneg %p667
        $region74: #{tpu_custom_call.1} parent=43 // pred_check_branch
          %670 = sbr.rel (%p668) target = $region76
        $region75: #{tpu_custom_call.1} parent=43 // pred_region
          %v671 = vld [vmem:[#allocation2] sm:$0xff]
          %v672 = vld [vmem:[#allocation2 + $0x8] sm:$0xff]
          %v673 = vld [vmem:[#allocation2 + $0x10] sm:$0xff]
          %v674 = vld [vmem:[#allocation2 + $0x18] sm:$0xff]
          %v675 = vld [vmem:[#allocation2 + $0x20] sm:$0xff]
          %v676 = vld [vmem:[#allocation2 + $0x28] sm:$0xff]
          %v677 = vld [vmem:[#allocation2 + $0x30] sm:$0xff]
          %v678 = vld [vmem:[#allocation2 + $0x38] sm:$0xff]
          %v679 = vpack.c.bf16 %v672, %v671
          %v680 = vpack.c.bf16 %v674, %v673
          %v681 = vpack.c.bf16 %v676, %v675
          %v682 = vpack.c.bf16 %v678, %v677
          %v683 = vld [vmem:[#allocation8] sm:$0xf]
          %v684 = vld [vmem:[#allocation8 + $0x4] sm:$0xf]
          %v685 = vld [vmem:[#allocation8 + $0x8] sm:$0xf]
          %v686 = vld [vmem:[#allocation8 + $0xc] sm:$0xf]
          %v687 = vld [vmem:[#allocation8 + $0x10] sm:$0xf]
          %v688 = vld [vmem:[#allocation8 + $0x14] sm:$0xf]
          %v689 = vld [vmem:[#allocation8 + $0x18] sm:$0xf]
          %v690 = vld [vmem:[#allocation8 + $0x1c] sm:$0xf]
          %v691 = vld [vmem:[#allocation8 + $0x20] sm:$0xf]
          %v692 = vld [vmem:[#allocation8 + $0x24] sm:$0xf]
          %v693 = vld [vmem:[#allocation8 + $0x28] sm:$0xf]
          %v694 = vld [vmem:[#allocation8 + $0x2c] sm:$0xf]
          %v695 = vld [vmem:[#allocation8 + $0x30] sm:$0xf]
          %v696 = vld [vmem:[#allocation8 + $0x34] sm:$0xf]
          %v697 = vld [vmem:[#allocation8 + $0x38] sm:$0xf]
          %v698 = vld [vmem:[#allocation8 + $0x3c] sm:$0xf]
          %v699 = vld [vmem:[#allocation9] sm:$0xf]
          %v700 = vld [vmem:[#allocation9 + $0x4] sm:$0xf]
          %v701 = vld [vmem:[#allocation9 + $0x8] sm:$0xf]
          %v702 = vld [vmem:[#allocation9 + $0xc] sm:$0xf]
          %v703 = vld [vmem:[#allocation9 + $0x10] sm:$0xf]
          %v704 = vld [vmem:[#allocation9 + $0x14] sm:$0xf]
          %v705 = vld [vmem:[#allocation9 + $0x18] sm:$0xf]
          %v706 = vld [vmem:[#allocation9 + $0x1c] sm:$0xf]
          %v707 = vld [vmem:[#allocation9 + $0x20] sm:$0xf]
          %v708 = vld [vmem:[#allocation9 + $0x24] sm:$0xf]
          %v709 = vld [vmem:[#allocation9 + $0x28] sm:$0xf]
          %v710 = vld [vmem:[#allocation9 + $0x2c] sm:$0xf]
          %v711 = vld [vmem:[#allocation9 + $0x30] sm:$0xf]
          %v712 = vld [vmem:[#allocation9 + $0x34] sm:$0xf]
          %v713 = vld [vmem:[#allocation9 + $0x38] sm:$0xf]
          %v714 = vld [vmem:[#allocation9 + $0x3c] sm:$0xf]
          %v731 = vunpack.c.l.b16 %v699
          %v732 = vunpack.c.l.b16 %v700
          %v733 = vunpack.c.l.b16 %v701
          %v734 = vunpack.c.l.b16 %v702
          %v735 = vunpack.c.l.b16 %v703
          %v736 = vunpack.c.l.b16 %v704
          %v737 = vunpack.c.l.b16 %v705
          %v738 = vunpack.c.l.b16 %v706
          %v739 = vunpack.c.l.b16 %v707
          %v740 = vunpack.c.l.b16 %v708
          %v741 = vunpack.c.l.b16 %v709
          %v742 = vunpack.c.l.b16 %v710
          %v743 = vunpack.c.l.b16 %v711
          %v744 = vunpack.c.l.b16 %v712
          %v745 = vunpack.c.l.b16 %v713
          %v746 = vunpack.c.l.b16 %v714
          %v747 = vpack.c.b16 %v732, %v731
          %v748 = vpack.c.b16 %v734, %v733
          %v749 = vpack.c.b16 %v736, %v735
          %v750 = vpack.c.b16 %v738, %v737
          %v751 = vpack.c.b16 %v740, %v739
          %v752 = vpack.c.b16 %v742, %v741
          %v753 = vpack.c.b16 %v744, %v743
          %v754 = vpack.c.b16 %v746, %v745
          %763 = vmatprep.subr.bf16.mxu0 0
          %764 = vmatpush1.bf16.msra.mxu0 %v747
          %765 = vmatprep.subr.bf16.mxu0 0
          %766 = vmatpush1.bf16.msra.mxu0 %v748
          %767 = vmatprep.subr.bf16.mxu0 0
          %768 = vmatpush1.bf16.msra.mxu0 %v749
          %769 = vmatprep.subr.bf16.mxu0 0
          %770 = vmatpush1.bf16.msra.mxu0 %v750
          %771 = vmatprep.subr.bf16.mxu0 0
          %772 = vmatpush1.bf16.msra.mxu0 %v751
          %773 = vmatprep.subr.bf16.mxu0 0
          %774 = vmatpush1.bf16.msra.mxu0 %v752
          %775 = vmatprep.subr.bf16.mxu0 0
          %776 = vmatpush1.bf16.msra.mxu0 %v753
          %777 = vmatprep.subr.bf16.mxu0 0
          %778 = vmatpush1.bf16.msra.mxu0 %v754
          %779 = vmatprep.subr.bf16.mxu0 0
          %780 = vmatpush1.bf16.msra.mxu0 0
          %781 = vmatprep.subr.bf16.mxu0 0
          %782 = vmatpush1.bf16.msra.mxu0 0
          %783 = vmatprep.subr.bf16.mxu0 0
          %784 = vmatpush1.bf16.msra.mxu0 0
          %785 = vmatprep.subr.bf16.mxu0 0
          %786 = vmatpush1.bf16.msra.mxu0 0
          %787 = vmatprep.subr.bf16.mxu0 0
          %788 = vmatpush1.bf16.msra.mxu0 0
          %789 = vmatprep.subr.bf16.mxu0 0
          %790 = vmatpush1.bf16.msra.mxu0 0
          %791 = vmatprep.subr.bf16.mxu0 0
          %792 = vmatpush1.bf16.msra.mxu0 0
          %793 = vmatprep.subr.bf16.mxu0 0
          %794 = vmatpush1.bf16.msra.mxu0 0
          %795 = vmatprep.mubr.bf16.mxu0 0
          %796 = vmatmul.mubr.bf16.gmra.mrb[0].mxu0 %v681
          %v797 = vpop.f32.mrb[0].mxu0
          %v798 = vadd.f32 0.0, %v797
          %v799 = vpop.f32.mrb[0].mxu0
          %v800 = vpop.f32.mrb[0].mxu0
          %v801 = vadd.f32 0.0, %v800
          %v802 = vpop.f32.mrb[0].mxu0
          %803 = vmatprep.mubr.bf16.mxu0 0
          %804 = vmatmul.mubr.bf16.gmra.mrb[0].mxu0 %v682
          %v805 = vpop.f32.mrb[0].mxu0
          %v806 = vadd.f32 0.0, %v805
          %v807 = vpop.f32.mrb[0].mxu0
          %v808 = vpop.f32.mrb[0].mxu0
          %v809 = vadd.f32 0.0, %v808
          %v810 = vpop.f32.mrb[0].mxu0
          %811 = vdwg.mxu0
          %v828 = vunpack.c.l.b16 %v683
          %v829 = vunpack.c.l.b16 %v684
          %v830 = vunpack.c.l.b16 %v685
          %v831 = vunpack.c.l.b16 %v686
          %v832 = vunpack.c.l.b16 %v687
          %v833 = vunpack.c.l.b16 %v688
          %v834 = vunpack.c.l.b16 %v689
          %v835 = vunpack.c.l.b16 %v690
          %v836 = vunpack.c.l.b16 %v691
          %v837 = vunpack.c.l.b16 %v692
          %v838 = vunpack.c.l.b16 %v693
          %v839 = vunpack.c.l.b16 %v694
          %v840 = vunpack.c.l.b16 %v695
          %v841 = vunpack.c.l.b16 %v696
          %v842 = vunpack.c.l.b16 %v697
          %v843 = vunpack.c.l.b16 %v698
          %v844 = vpack.c.b16 %v829, %v828
          %v845 = vpack.c.b16 %v831, %v830
          %v846 = vpack.c.b16 %v833, %v832
          %v847 = vpack.c.b16 %v835, %v834
          %v848 = vpack.c.b16 %v837, %v836
          %v849 = vpack.c.b16 %v839, %v838
          %v850 = vpack.c.b16 %v841, %v840
          %v851 = vpack.c.b16 %v843, %v842
          %860 = vmatprep.subr.bf16.mxu0 0
          %861 = vmatpush1.bf16.msra.mxu0 %v844
          %862 = vmatprep.subr.bf16.mxu0 0
          %863 = vmatpush1.bf16.msra.mxu0 %v845
          %864 = vmatprep.subr.bf16.mxu0 0
          %865 = vmatpush1.bf16.msra.mxu0 %v846
          %866 = vmatprep.subr.bf16.mxu0 0
          %867 = vmatpush1.bf16.msra.mxu0 %v847
          %868 = vmatprep.subr.bf16.mxu0 0
          %869 = vmatpush1.bf16.msra.mxu0 %v848
          %870 = vmatprep.subr.bf16.mxu0 0
          %871 = vmatpush1.bf16.msra.mxu0 %v849
          %872 = vmatprep.subr.bf16.mxu0 0
          %873 = vmatpush1.bf16.msra.mxu0 %v850
          %874 = vmatprep.subr.bf16.mxu0 0
          %875 = vmatpush1.bf16.msra.mxu0 %v851
          %876 = vmatprep.subr.bf16.mxu0 0
          %877 = vmatpush1.bf16.msra.mxu0 0
          %878 = vmatprep.subr.bf16.mxu0 0
          %879 = vmatpush1.bf16.msra.mxu0 0
          %880 = vmatprep.subr.bf16.mxu0 0
          %881 = vmatpush1.bf16.msra.mxu0 0
          %882 = vmatprep.subr.bf16.mxu0 0
          %883 = vmatpush1.bf16.msra.mxu0 0
          %884 = vmatprep.subr.bf16.mxu0 0
          %885 = vmatpush1.bf16.msra.mxu0 0
          %886 = vmatprep.subr.bf16.mxu0 0
          %887 = vmatpush1.bf16.msra.mxu0 0
          %888 = vmatprep.subr.bf16.mxu0 0
          %889 = vmatpush1.bf16.msra.mxu0 0
          %890 = vmatprep.subr.bf16.mxu0 0
          %891 = vmatpush1.bf16.msra.mxu0 0
          %892 = vmatprep.mubr.bf16.mxu0 0
          %893 = vmatmul.mubr.bf16.gmra.mrb[0].mxu0 %v679
          %v894 = vpop.f32.mrb[0].mxu0
          %v895 = vadd.f32 %v798, %v894
          %v896 = vpop.f32.mrb[0].mxu0
          %v897 = vpop.f32.mrb[0].mxu0
          %v898 = vadd.f32 %v801, %v897
          %v899 = vpop.f32.mrb[0].mxu0
          %900 = vmatprep.mubr.bf16.mxu0 0
          %901 = vmatmul.mubr.bf16.gmra.mrb[0].mxu0 %v680
          %v902 = vpop.f32.mrb[0].mxu0
          %v903 = vadd.f32 %v806, %v902
          %v904 = vpop.f32.mrb[0].mxu0
          %v905 = vpop.f32.mrb[0].mxu0
          %v906 = vadd.f32 %v809, %v905
          %v907 = vpop.f32.mrb[0].mxu0
          %908 = vdwg.mxu0
          %v909 = vld [vmem:[#allocation11] sm:$0xf]
          %v910 = vld [vmem:[#allocation11 + $0x4] sm:$0xf]
          %v911 = vld [vmem:[#allocation11 + $0x8] sm:$0xf]
          %v912 = vld [vmem:[#allocation11 + $0xc] sm:$0xf]
          %v913 = vld [vmem:[#allocation11 + $0x10] sm:$0xf]
          %v914 = vld [vmem:[#allocation11 + $0x14] sm:$0xf]
          %v915 = vld [vmem:[#allocation11 + $0x18] sm:$0xf]
          %v916 = vld [vmem:[#allocation11 + $0x1c] sm:$0xf]
          %v917 = vld [vmem:[#allocation11 + $0x20] sm:$0xf]
          %v918 = vld [vmem:[#allocation11 + $0x24] sm:$0xf]
          %v919 = vld [vmem:[#allocation11 + $0x28] sm:$0xf]
          %v920 = vld [vmem:[#allocation11 + $0x2c] sm:$0xf]
          %v921 = vld [vmem:[#allocation11 + $0x30] sm:$0xf]
          %v922 = vld [vmem:[#allocation11 + $0x34] sm:$0xf]
          %v923 = vld [vmem:[#allocation11 + $0x38] sm:$0xf]
          %v924 = vld [vmem:[#allocation11 + $0x3c] sm:$0xf]
          %v925 = vld [vmem:[#allocation12] sm:$0xf]
          %v926 = vld [vmem:[#allocation12 + $0x4] sm:$0xf]
          %v927 = vld [vmem:[#allocation12 + $0x8] sm:$0xf]
          %v928 = vld [vmem:[#allocation12 + $0xc] sm:$0xf]
          %v929 = vld [vmem:[#allocation12 + $0x10] sm:$0xf]
          %v930 = vld [vmem:[#allocation12 + $0x14] sm:$0xf]
          %v931 = vld [vmem:[#allocation12 + $0x18] sm:$0xf]
          %v932 = vld [vmem:[#allocation12 + $0x1c] sm:$0xf]
          %v933 = vld [vmem:[#allocation12 + $0x20] sm:$0xf]
          %v934 = vld [vmem:[#allocation12 + $0x24] sm:$0xf]
          %v935 = vld [vmem:[#allocation12 + $0x28] sm:$0xf]
          %v936 = vld [vmem:[#allocation12 + $0x2c] sm:$0xf]
          %v937 = vld [vmem:[#allocation12 + $0x30] sm:$0xf]
          %v938 = vld [vmem:[#allocation12 + $0x34] sm:$0xf]
          %v939 = vld [vmem:[#allocation12 + $0x38] sm:$0xf]
          %v940 = vld [vmem:[#allocation12 + $0x3c] sm:$0xf]
          %v957 = vunpack.c.l.b16 %v925
          %v958 = vunpack.c.l.b16 %v926
          %v959 = vunpack.c.l.b16 %v927
          %v960 = vunpack.c.l.b16 %v928
          %v961 = vunpack.c.l.b16 %v929
          %v962 = vunpack.c.l.b16 %v930
          %v963 = vunpack.c.l.b16 %v931
          %v964 = vunpack.c.l.b16 %v932
          %v965 = vunpack.c.l.b16 %v933
          %v966 = vunpack.c.l.b16 %v934
          %v967 = vunpack.c.l.b16 %v935
          %v968 = vunpack.c.l.b16 %v936
          %v969 = vunpack.c.l.b16 %v937
          %v970 = vunpack.c.l.b16 %v938
          %v971 = vunpack.c.l.b16 %v939
          %v972 = vunpack.c.l.b16 %v940
          %v973 = vpack.c.b16 %v958, %v957
          %v974 = vpack.c.b16 %v960, %v959
          %v975 = vpack.c.b16 %v962, %v961
          %v976 = vpack.c.b16 %v964, %v963
          %v977 = vpack.c.b16 %v966, %v965
          %v978 = vpack.c.b16 %v968, %v967
          %v979 = vpack.c.b16 %v970, %v969
          %v980 = vpack.c.b16 %v972, %v971
          %989 = vmatprep.subr.bf16.mxu0 0
          %990 = vmatpush1.bf16.msra.mxu0 %v973
          %991 = vmatprep.subr.bf16.mxu0 0
          %992 = vmatpush1.bf16.msra.mxu0 %v974
          %993 = vmatprep.subr.bf16.mxu0 0
          %994 = vmatpush1.bf16.msra.mxu0 %v975
          %995 = vmatprep.subr.bf16.mxu0 0
          %996 = vmatpush1.bf16.msra.mxu0 %v976
          %997 = vmatprep.subr.bf16.mxu0 0
          %998 = vmatpush1.bf16.msra.mxu0 %v977
          %999 = vmatprep.subr.bf16.mxu0 0
          %1000 = vmatpush1.bf16.msra.mxu0 %v978
          %1001 = vmatprep.subr.bf16.mxu0 0
          %1002 = vmatpush1.bf16.msra.mxu0 %v979
          %1003 = vmatprep.subr.bf16.mxu0 0
          %1004 = vmatpush1.bf16.msra.mxu0 %v980
          %1005 = vmatprep.subr.bf16.mxu0 0
          %1006 = vmatpush1.bf16.msra.mxu0 0
          %1007 = vmatprep.subr.bf16.mxu0 0
          %1008 = vmatpush1.bf16.msra.mxu0 0
          %1009 = vmatprep.subr.bf16.mxu0 0
          %1010 = vmatpush1.bf16.msra.mxu0 0
          %1011 = vmatprep.subr.bf16.mxu0 0
          %1012 = vmatpush1.bf16.msra.mxu0 0
          %1013 = vmatprep.subr.bf16.mxu0 0
          %1014 = vmatpush1.bf16.msra.mxu0 0
          %1015 = vmatprep.subr.bf16.mxu0 0
          %1016 = vmatpush1.bf16.msra.mxu0 0
          %1017 = vmatprep.subr.bf16.mxu0 0
          %1018 = vmatpush1.bf16.msra.mxu0 0
          %1019 = vmatprep.subr.bf16.mxu0 0
          %1020 = vmatpush1.bf16.msra.mxu0 0
          %1021 = vmatprep.mubr.bf16.mxu0 0
          %1022 = vmatmul.mubr.bf16.gmra.mrb[0].mxu0 %v681
          %v1023 = vpop.f32.mrb[0].mxu0
          %v1024 = vadd.f32 0.0, %v1023
          %v1025 = vpop.f32.mrb[0].mxu0
          %v1026 = vpop.f32.mrb[0].mxu0
          %v1027 = vadd.f32 0.0, %v1026
          %v1028 = vpop.f32.mrb[0].mxu0
          %1029 = vmatprep.mubr.bf16.mxu0 0
          %1030 = vmatmul.mubr.bf16.gmra.mrb[0].mxu0 %v682
          %v1031 = vpop.f32.mrb[0].mxu0
          %v1032 = vadd.f32 0.0, %v1031
          %v1033 = vpop.f32.mrb[0].mxu0
          %v1034 = vpop.f32.mrb[0].mxu0
          %v1035 = vadd.f32 0.0, %v1034
          %v1036 = vpop.f32.mrb[0].mxu0
          %1037 = vdwg.mxu0
          %v1054 = vunpack.c.l.b16 %v909
          %v1055 = vunpack.c.l.b16 %v910
          %v1056 = vunpack.c.l.b16 %v911
          %v1057 = vunpack.c.l.b16 %v912
          %v1058 = vunpack.c.l.b16 %v913
          %v1059 = vunpack.c.l.b16 %v914
          %v1060 = vunpack.c.l.b16 %v915
          %v1061 = vunpack.c.l.b16 %v916
          %v1062 = vunpack.c.l.b16 %v917
          %v1063 = vunpack.c.l.b16 %v918
          %v1064 = vunpack.c.l.b16 %v919
          %v1065 = vunpack.c.l.b16 %v920
          %v1066 = vunpack.c.l.b16 %v921
          %v1067 = vunpack.c.l.b16 %v922
          %v1068 = vunpack.c.l.b16 %v923
          %v1069 = vunpack.c.l.b16 %v924
          %v1070 = vpack.c.b16 %v1055, %v1054
          %v1071 = vpack.c.b16 %v1057, %v1056
          %v1072 = vpack.c.b16 %v1059, %v1058
          %v1073 = vpack.c.b16 %v1061, %v1060
          %v1074 = vpack.c.b16 %v1063, %v1062
          %v1075 = vpack.c.b16 %v1065, %v1064
          %v1076 = vpack.c.b16 %v1067, %v1066
          %v1077 = vpack.c.b16 %v1069, %v1068
          %1086 = vmatprep.subr.bf16.mxu0 0
          %1087 = vmatpush1.bf16.msra.mxu0 %v1070
          %1088 = vmatprep.subr.bf16.mxu0 0
          %1089 = vmatpush1.bf16.msra.mxu0 %v1071
          %1090 = vmatprep.subr.bf16.mxu0 0
          %1091 = vmatpush1.bf16.msra.mxu0 %v1072
          %1092 = vmatprep.subr.bf16.mxu0 0
          %1093 = vmatpush1.bf16.msra.mxu0 %v1073
          %1094 = vmatprep.subr.bf16.mxu0 0
          %1095 = vmatpush1.bf16.msra.mxu0 %v1074
          %1096 = vmatprep.subr.bf16.mxu0 0
          %1097 = vmatpush1.bf16.msra.mxu0 %v1075
          %1098 = vmatprep.subr.bf16.mxu0 0
          %1099 = vmatpush1.bf16.msra.mxu0 %v1076
          %1100 = vmatprep.subr.bf16.mxu0 0
          %1101 = vmatpush1.bf16.msra.mxu0 %v1077
          %1102 = vmatprep.subr.bf16.mxu0 0
          %1103 = vmatpush1.bf16.msra.mxu0 0
          %1104 = vmatprep.subr.bf16.mxu0 0
          %1105 = vmatpush1.bf16.msra.mxu0 0
          %1106 = vmatprep.subr.bf16.mxu0 0
          %1107 = vmatpush1.bf16.msra.mxu0 0
          %1108 = vmatprep.subr.bf16.mxu0 0
          %1109 = vmatpush1.bf16.msra.mxu0 0
          %1110 = vmatprep.subr.bf16.mxu0 0
          %1111 = vmatpush1.bf16.msra.mxu0 0
          %1112 = vmatprep.subr.bf16.mxu0 0
          %1113 = vmatpush1.bf16.msra.mxu0 0
          %1114 = vmatprep.subr.bf16.mxu0 0
          %1115 = vmatpush1.bf16.msra.mxu0 0
          %1116 = vmatprep.subr.bf16.mxu0 0
          %1117 = vmatpush1.bf16.msra.mxu0 0
          %1118 = vmatprep.mubr.bf16.mxu0 0
          %1119 = vmatmul.mubr.bf16.gmra.mrb[0].mxu0 %v679
          %v1120 = vpop.f32.mrb[0].mxu0
          %v1121 = vadd.f32 %v1024, %v1120
          %v1122 = vpop.f32.mrb[0].mxu0
          %v1123 = vpop.f32.mrb[0].mxu0
          %v1124 = vadd.f32 %v1027, %v1123
          %v1125 = vpop.f32.mrb[0].mxu0
          %1126 = vmatprep.mubr.bf16.mxu0 0
          %1127 = vmatmul.mubr.bf16.gmra.mrb[0].mxu0 %v680
          %v1128 = vpop.f32.mrb[0].mxu0
          %v1129 = vadd.f32 %v1032, %v1128
          %v1130 = vpop.f32.mrb[0].mxu0
          %v1131 = vpop.f32.mrb[0].mxu0
          %v1132 = vadd.f32 %v1035, %v1131
          %v1133 = vpop.f32.mrb[0].mxu0
          %1134 = vdwg.mxu0
          %v1135 = vpack.c.bf16 %v898, %v895
          %v1136 = vpack.c.bf16 %v906, %v903
          %v1139 = vunpack.c.l.b16 %v1135
          %v1140 = vunpack.c.h.b16 %v1135
          %v1141 = vunpack.c.l.b16 %v1136
          %v1142 = vunpack.c.h.b16 %v1136
          %v1143 = vpack.c.b16 %v1139, %v1139
          %v1144 = vpack.c.b16 %v1140, %v1140
          %v1145 = vpack.c.b16 %v1141, %v1141
          %v1146 = vpack.c.b16 %v1142, %v1142
          %1151 = vst [vmem:[%s384] sm:$0xf] %v1143
          %1152 = vst [vmem:[%s384 + $0x4] sm:$0xf] %v1144
          %1153 = vst [vmem:[%s384 + $0x8] sm:$0xf] %v1145
          %1154 = vst [vmem:[%s384 + $0xc] sm:$0xf] %v1146
          %v1155 = vpack.c.bf16 %v1124, %v1121
          %v1156 = vpack.c.bf16 %v1132, %v1129
          %v1159 = vunpack.c.l.b16 %v1155
          %v1160 = vunpack.c.h.b16 %v1155
          %v1161 = vunpack.c.l.b16 %v1156
          %v1162 = vunpack.c.h.b16 %v1156
          %v1163 = vpack.c.b16 %v1159, %v1159
          %v1164 = vpack.c.b16 %v1160, %v1160
          %v1165 = vpack.c.b16 %v1161, %v1161
          %v1166 = vpack.c.b16 %v1162, %v1162
          %s1171 = scalar_lea.vmem %s384, 16 [#allocation14]
          %1172 = vst [vmem:[%s1171] sm:$0xf] %v1163
          %1173 = vst [vmem:[%s1171 + $0x4] sm:$0xf] %v1164
          %1174 = vst [vmem:[%s1171 + $0x8] sm:$0xf] %v1165
          %1175 = vst [vmem:[%s1171 + $0xc] sm:$0xf] %v1166
        $region76: #{tpu_custom_call.1} parent=43 // pred_fallthru
          _
        %s1176 = sand.u32 %s186, 1
        %s1177 = scalar_lea.sflag [#allocation5], %s1176
        %s1178 = sand.u32 %s186, 1
        %s1179 = smul.addr %s1178, 32
        %s1180 = scalar_lea.vmem [#allocation14], %s1179
        // Predicated region
        $region77: #{tpu_custom_call.1} parent=43 // pred_check
          %p1181 = pneg %p196
        $region78: #{tpu_custom_call.1} parent=43 // pred_check_branch
          %1183 = sbr.rel (%p1181) target = $region80
        $region79: #{tpu_custom_call.1} parent=43 // pred_region
          #allocation16 [shape = 'u32[6]{0}', space=smem, size = 0x18, scoped, tag = 'DMA stride descriptor']
          %s1184 = smul.u32 4, %s32
          %s1186 = ssub.s32 512, 512
          %1187 = vsyncadd %s1177, %s1186
          %s1188 = smul.addr %s1184, 64
          %s1189 = scalar_lea.hbm %s6, %s1188
          %s1191 = sshll.u32 1, 14
          %s1192 = sxor.u32 4294967295, %s1191
          %s1195 = sshll.u32 7, 18
          %s1196 = sxor.u32 4294967295, %s1195
          %s1197 = sand.u32 0, %s1196
          %s1199 = sor.u32 %s1197, 0
          %s1201 = sshll.u32 3, 24
          %s1202 = sxor.u32 4294967295, %s1201
          %s1203 = sand.u32 %s1199, %s1202
          %s1205 = sor.u32 %s1203, 0
          %s1206 = sshll.u32 %s1180, 4
          %s1207 = int_to_ptr.vmem [resolvable:$true] %s1206
          %1213 = sst [smem:[#allocation16]] 256
          %s1214 = scalar_lea.smem [#allocation16], 1
          %1215 = sst [smem:[%s1214]] 512
          %s1216 = scalar_lea.smem [#allocation16], 2
          %1217 = sst [smem:[%s1216]] 4
          %s1218 = scalar_lea.smem [#allocation16], 3
          %1219 = sst [smem:[%s1218]] 64
          %s1220 = scalar_lea.smem [#allocation16], 4
          %1221 = sst [smem:[%s1220]] 64
          %s1222 = scalar_lea.smem [#allocation16], 5
          %1223 = sst [smem:[%s1222]] 4
          %1225 = dma.general %s1207, 512, %s1189, %s1177, [#allocation15], [#allocation16], %s1205, 0
        $region80: #{tpu_custom_call.1} parent=43 // pred_fallthru
          _
      $region44: #{tpu_custom_call.1} parent=5 // pred_fallthru
        _
      %p1226 = scmp.le.s32.totalorder 2, %s23
      // Predicated region
      $region81: #{tpu_custom_call.1} parent=5 // pred_check
        %p1227 = pneg %p1226
      $region82: #{tpu_custom_call.1} parent=5 // pred_check_branch
        %1229 = sbr.rel (%p1227) target = $region84
      $region83: #{tpu_custom_call.1} parent=5 // pred_region
        %s1230 = ssub.s32 %s23, 2
        // Predicated region
        $region85: #{tpu_custom_call.1} parent=83 // pred_check
          %p1231 = pneg %p202
        $region86: #{tpu_custom_call.1} parent=83 // pred_check_branch
          %1233 = sbr.rel (%p1231) target = $region88
        $region87: #{tpu_custom_call.1} parent=83 // pred_region
          %s1234 = sand.u32 %s187, 1
          %s1235 = scalar_lea.sflag [#allocation5], %s1234
          %s1236 = sand.u32 %s187, 1
          %s1237 = smul.addr %s1236, 32
          %s1238 = scalar_lea.vmem [#allocation14], %s1237
          %1239 = dma.done %s1235, 512
        $region88: #{tpu_custom_call.1} parent=83 // pred_fallthru
          _
      $region84: #{tpu_custom_call.1} parent=5 // pred_fallthru
        _
    $region6: #{tpu_custom_call.1} parent=1 // loop_footer
      %s27 = sadd.s32 1, %s23
    $region7: #{tpu_custom_call.1} parent=1 // loop_footer_branch
      %22 = sbr.rel target = $region3
    $region8: #{tpu_custom_call.1} parent=1 // loop_exit
      _
    %1240 = vsyncpa [#allocation4], 1
    %s1241 = scalar_lea.sflag [#allocation4], 1
    %1242 = vsyncpa %s1241, 1
    %1243 = vsyncpa [#allocation7], 1
    %s1244 = scalar_lea.sflag [#allocation7], 1
    %1245 = vsyncpa %s1244, 1
    %1246 = vsyncpa [#allocation10], 1
    %1247 = vsyncpa [#allocation13], 1
    %1248 = vsyncpa [#allocation5], 1
    %s1249 = scalar_lea.sflag [#allocation5], 1
    %1250 = vsyncpa %s1249, 1

</llo_original>
